<compile_context>
chip_gen: v5e
topology: v5e:2x2
jax: 0.10.0
libtpu: 0.0.40
codegen_flags: <defaults>
</compile_context>

<pallas_src>
import functools

import jax
import jax.numpy as jnp
from jax.experimental import pallas as pl
from jax.experimental.pallas import tpu as pltpu


def _round_up(v, m):
    return ((v + m - 1) // m) * m


def _largest_divisor_leq(n, cap):
    cap = max(1, min(n, cap))
    for d in range(cap, 0, -1):
        if n % d == 0:
            return d
    return 1


def _spatial_attention_kernel(x_ref, w_ref, mask_ref, o_ref, pad_ref, *,
                              kernel_size, H, W):
    """One grid step over Nb batch elements, lane-dense (H*W) layout throughout.

    x_ref   : (Nb, C, HW)  VMEM, input dtype (f32 or bf16)
    w_ref   : (2*k*k,)     SMEM, f32 conv weights (OIHW flattened)
    mask_ref: (k, HW)      VMEM, f32 column-validity mask per horizontal tap dx
    o_ref   : (Nb, 1, HW)  VMEM
    pad_ref : (Nb, 2, Lr)  VMEM f32 scratch: flattened 2-channel map with a
                           (p*W + p)-wide zero halo on each side so every conv
                           tap is a static lane-offset slice (vertical halo ->
                           zero pad, horizontal wrap -> column mask).
    """
    k = kernel_size
    p = k // 2
    Nb, C, HW = x_ref.shape
    P0 = p * W + p                      # offset of the un-padded map in pad_ref
    Lr = pad_ref.shape[-1]

    # 1) Channel reduction (mean & max over C), lane-dense, per-channel loads.
    x0 = x_ref[:, 0, :].astype(jnp.float32)
    s = x0
    m = x0
    for c in range(1, C):               # C is static (block shape) -> unrolls
        xc = x_ref[:, c, :].astype(jnp.float32)
        s = s + xc
        m = jnp.maximum(m, xc)
    avg = s * (1.0 / C)

    # 2) Stage the reduced map into the flat padded scratch.  Only the halo is
    #    zeroed, every step (cheap; and safe under megacore grid sharding where
    #    program_id==0 may never run on a given core). Interior fully rewritten.
    if P0 > 0:
        pad_ref[:, :, :P0] = jnp.zeros((Nb, 2, P0), jnp.float32)
    if Lr > P0 + HW:
        pad_ref[:, :, P0 + HW:] = jnp.zeros((Nb, 2, Lr - (P0 + HW)), jnp.float32)
    pad_ref[:, 0, P0:P0 + HW] = avg
    pad_ref[:, 1, P0:P0 + HW] = m

    # 3) Direct k x k "same" conv as 2*k*k shifted-window FMAs on the VPU
    #    (contraction depth 2*k*k would be <1% MXU utilization).  Tap
    #    (ci, dy, dx) == static lane-offset slice at dy*W + dx; horizontal
    #    out-of-range taps are zeroed once per dx via the column mask.
    acc = jnp.zeros((Nb, HW), jnp.float32)
    for dx in range(k):
        t = jnp.zeros((Nb, HW), jnp.float32)
        for ci in range(2):
            for dy in range(k):
                wgt = w_ref[ci * k * k + dy * k + dx]     # SMEM scalar broadcast
                start = dy * W + dx
                t = t + pad_ref[:, ci, start:start + HW] * wgt
        acc = acc + t * mask_ref[dx:dx + 1, :]

    # 4) Sigmoid gate (EUP) + lane-dense store.
    o_ref[:, 0, :] = jax.nn.sigmoid(acc).astype(o_ref.dtype)


def spatial_attention(x, conv_weight, *, batch_tile=None):
    """SpatialAttention forward.

    x:           (N, C, H, W)   any float dtype (bf16 passes straight through)
    conv_weight: (1, 2, k, k)   PyTorch OIHW layout, bias-free
    returns:     (N, 1, H, W)   sigmoid attention map, dtype of x
    """
    N, C, H, W = x.shape
    oc, ic, k, k2 = conv_weight.shape
    assert oc == 1 and ic == 2 and k == k2, "expected Conv2d(2, 1, k, k) weights"
    p = k // 2
    HW = H * W
    P0 = p * W + p
    Lr = _round_up(HW + 2 * P0, 128)          # lane-rounded flat scratch length

    # Lane-dense layouts for the kernel; keep x's dtype (no f32 pre-cast).
    x_flat = x.reshape(N, C, HW)
    w_flat = conv_weight.reshape(-1).astype(jnp.float32)        # (2*k*k,)

    # Column-validity mask per horizontal tap offset dx - p (kills row wrap).
    col = jnp.arange(HW, dtype=jnp.int32) % W                    # (HW,)
    off = jnp.arange(k, dtype=jnp.int32)[:, None] - p            # (k, 1)
    col_mask = ((col[None, :] + off >= 0) &
                (col[None, :] + off < W)).astype(jnp.float32)    # (k, HW)

    # ---- batch-tile sizing against the per-generation VMEM budget -----------
    try:
        vmem_cap = int(pltpu.get_tpu_info().vmem_capacity_bytes)
    except Exception:
        vmem_cap = 64 << 20                    # conservative (v7x per-TC VMEM)
    vmem_budget = max(8 << 20, vmem_cap // 2)  # leave double-buffer/compiler headroom

    itemsize = x.dtype.itemsize
    per_elem = (2 * C * HW * itemsize          # input block (double-buffered)
                + 2 * HW * itemsize            # output block (double-buffered)
                + 2 * Lr * 4)                  # f32 flat pad scratch
    fixed = 2 * k * HW * 4 + (1 << 20)         # mask input + slack
    nb_vmem = max(1, (vmem_budget - fixed) // per_elem)
    # Keep >= min(N, 4) grid steps so each of the 2 TensorCores (v7x megacore)
    # gets >= 2 steps and DMA/compute overlap survives the parallel split.
    nb_steps = max(1, N // min(N, 4))
    nb_cap = int(min(nb_vmem, nb_steps, N))
    if batch_tile is not None:
        nb_cap = min(nb_cap, int(batch_tile))
    nb = _largest_divisor_leq(N, nb_cap)
    grid = (N // nb,)

    kernel = functools.partial(_spatial_attention_kernel, kernel_size=k, H=H, W=W)

    out_flat = pl.pallas_call(
        kernel,
        out_shape=jax.ShapeDtypeStruct((N, 1, HW), x.dtype),
        grid=grid,
        in_specs=[
            # Nb batch elements per step; (C, HW) are full dims so the (8,128)
            # rule is satisfied by full-extent blocks.
            pl.BlockSpec((nb, C, HW), lambda n: (n, 0, 0)),
            # Small scalar weight table -> SMEM.
            pl.BlockSpec(memory_space=pltpu.MemorySpace.SMEM),
            # Column masks: constant block index -> stays resident across steps.
            pl.BlockSpec((k, HW), lambda n: (0, 0)),
        ],
        out_specs=pl.BlockSpec((nb, 1, HW), lambda n: (n, 0, 0)),
        scratch_shapes=[pltpu.VMEM((nb, 2, Lr), jnp.float32)],
        compiler_params=pltpu.CompilerParams(
            dimension_semantics=("parallel",),      # shard batch across TCs (v7x)
            vmem_limit_bytes=int(vmem_budget),      # raise 32/16 MiB scoped default (v6e/v5e)
        ),
    )(x_flat, w_flat, col_mask)

    return out_flat.reshape(N, 1, H, W)


if __name__ == "__main__":
    key = jax.random.PRNGKey(0)
    kx, kw = jax.random.split(key)

    N, C, H, W = 2, 4, 16, 16
    x = jax.random.normal(kx, (N, C, H, W), dtype=jnp.float32)
    # Conv2d(2, 1, kernel_size=3, padding=1, bias=False) weights, OIHW.
    conv_w = jax.random.normal(kw, (1, 2, 3, 3), dtype=jnp.float32) * 0.1

    y = spatial_attention(x, conv_w)
    jax.block_until_ready(y)

    # Pure-JAX reference.
    avg = jnp.mean(x, axis=1, keepdims=True)
    mx = jnp.max(x, axis=1, keepdims=True)
    cat = jnp.concatenate([avg, mx], axis=1)       # (N, 2, H, W)
    ref = jax.lax.conv_general_dilated(
        cat, conv_w,
        window_strides=(1, 1),
        padding=((1, 1), (1, 1)),
        dimension_numbers=("NCHW", "OIHW", "NCHW"),
        precision=jax.lax.Precision.HIGHEST,
    )
    ref = jax.nn.sigmoid(ref)

    assert y.shape == (N, 1, H, W)
    assert jnp.allclose(y, ref, atol=1e-4, rtol=1e-4), "mismatch vs reference"
    print("KERNEL_OK")
</pallas_src>

<mosaic_0001>
module attributes {stable_mosaic.version = 11 : i64} {
  func.func @_spatial_attention_kernel(%arg0: i32, %arg1: memref<1x4x256xf32, #tpu.memory_space<vmem>>, %arg2: memref<18xf32, #tpu.memory_space<smem>>, %arg3: memref<3x256xf32, #tpu.memory_space<vmem>>, %arg4: memref<1x1x256xf32, #tpu.memory_space<vmem>>, %arg5: memref<1x2x384xf32, #tpu.memory_space<vmem>>) attributes {dimension_semantics = [#tpu.dimension_semantics<parallel>], iteration_bounds = array<i64: 2>, scalar_prefetch = 0 : i64, scratch_operands = 1 : i64, tpu.core_type = #tpu.core_type<tc>, window_params = [{transform_indices = @transform_0, window_bounds = array<i64: 1, 4, 256>}, {transform_indices = @transform_1, window_bounds = array<i64: 18>}, {pipeline_mode = #tpu.pipeline_mode<synchronous>, transform_indices = @transform_2, window_bounds = array<i64: 3, 256>}, {transform_indices = @transform_3, window_bounds = array<i64: 1, 1, 256>}]} {
    %c0 = arith.constant 0 : index
    %c0_0 = arith.constant 0 : index
    %c0_1 = arith.constant 0 : index
    %0 = vector.load %arg1[%c0, %c0_0, %c0_1] : memref<1x4x256xf32, #tpu.memory_space<vmem>>, vector<1x1x256xf32>
    %1 = vector.shape_cast %0 : vector<1x1x256xf32> to vector<1x256xf32>
    %c0_2 = arith.constant 0 : index
    %c1 = arith.constant 1 : index
    %c0_3 = arith.constant 0 : index
    %2 = vector.load %arg1[%c0_2, %c1, %c0_3] : memref<1x4x256xf32, #tpu.memory_space<vmem>>, vector<1x1x256xf32>
    %3 = vector.shape_cast %2 : vector<1x1x256xf32> to vector<1x256xf32>
    %4 = arith.addf %1, %3 : vector<1x256xf32>
    %5 = arith.maximumf %1, %3 : vector<1x256xf32>
    %c0_4 = arith.constant 0 : index
    %c2 = arith.constant 2 : index
    %c0_5 = arith.constant 0 : index
    %6 = vector.load %arg1[%c0_4, %c2, %c0_5] : memref<1x4x256xf32, #tpu.memory_space<vmem>>, vector<1x1x256xf32>
    %7 = vector.shape_cast %6 : vector<1x1x256xf32> to vector<1x256xf32>
    %8 = arith.addf %4, %7 : vector<1x256xf32>
    %9 = arith.maximumf %5, %7 : vector<1x256xf32>
    %c0_6 = arith.constant 0 : index
    %c3 = arith.constant 3 : index
    %c0_7 = arith.constant 0 : index
    %10 = vector.load %arg1[%c0_6, %c3, %c0_7] : memref<1x4x256xf32, #tpu.memory_space<vmem>>, vector<1x1x256xf32>
    %11 = vector.shape_cast %10 : vector<1x1x256xf32> to vector<1x256xf32>
    %12 = arith.addf %8, %11 : vector<1x256xf32>
    %13 = arith.maximumf %9, %11 : vector<1x256xf32>
    %cst = arith.constant 2.500000e-01 : f32
    %14 = vector.broadcast %cst : f32 to vector<1x256xf32>
    %15 = arith.mulf %12, %14 : vector<1x256xf32>
    %cst_8 = arith.constant 0.000000e+00 : f32
    %16 = vector.broadcast %cst_8 : f32 to vector<1x2x17xf32>
    %c0_9 = arith.constant 0 : index
    %c0_10 = arith.constant 0 : index
    %c0_11 = arith.constant 0 : index
    %17 = vector.load %arg5[%c0_9, %c0_10, %c0_11] : memref<1x2x384xf32, #tpu.memory_space<vmem>>, vector<1x2x17xf32>
    tpu.vector_store %arg5[%c0_9, %c0_10, %c0_11], %16 {strides = array<i32>} : memref<1x2x384xf32, #tpu.memory_space<vmem>>, vector<1x2x17xf32>,
    %cst_12 = arith.constant 0.000000e+00 : f32
    %18 = vector.broadcast %cst_12 : f32 to vector<1x2x111xf32>
    %c0_13 = arith.constant 0 : index
    %c0_14 = arith.constant 0 : index
    %c273 = arith.constant 273 : index
    %19 = vector.load %arg5[%c0_13, %c0_14, %c273] : memref<1x2x384xf32, #tpu.memory_space<vmem>>, vector<1x2x111xf32>
    tpu.vector_store %arg5[%c0_13, %c0_14, %c273], %18 {strides = array<i32>} : memref<1x2x384xf32, #tpu.memory_space<vmem>>, vector<1x2x111xf32>,
    %c0_15 = arith.constant 0 : index
    %c0_16 = arith.constant 0 : index
    %c17 = arith.constant 17 : index
    %20 = vector.load %arg5[%c0_15, %c0_16, %c17] : memref<1x2x384xf32, #tpu.memory_space<vmem>>, vector<1x1x256xf32>
    %21 = vector.shape_cast %20 : vector<1x1x256xf32> to vector<1x256xf32>
    %22 = vector.shape_cast %15 : vector<1x256xf32> to vector<1x1x256xf32>
    tpu.vector_store %arg5[%c0_15, %c0_16, %c17], %22 {strides = array<i32>} : memref<1x2x384xf32, #tpu.memory_space<vmem>>, vector<1x1x256xf32>,
    %c0_17 = arith.constant 0 : index
    %c1_18 = arith.constant 1 : index
    %c17_19 = arith.constant 17 : index
    %23 = vector.load %arg5[%c0_17, %c1_18, %c17_19] : memref<1x2x384xf32, #tpu.memory_space<vmem>>, vector<1x1x256xf32>
    %24 = vector.shape_cast %23 : vector<1x1x256xf32> to vector<1x256xf32>
    %25 = vector.shape_cast %13 : vector<1x256xf32> to vector<1x1x256xf32>
    tpu.vector_store %arg5[%c0_17, %c1_18, %c17_19], %25 {strides = array<i32>} : memref<1x2x384xf32, #tpu.memory_space<vmem>>, vector<1x1x256xf32>,
    %cst_20 = arith.constant 0.000000e+00 : f32
    %26 = vector.broadcast %cst_20 : f32 to vector<1x256xf32>
    %cst_21 = arith.constant 0.000000e+00 : f32
    %27 = vector.broadcast %cst_21 : f32 to vector<1x256xf32>
    %c0_22 = arith.constant 0 : index
    %28 = memref.load %arg2[%c0_22] : memref<18xf32, #tpu.memory_space<smem>>
    %c0_23 = arith.constant 0 : index
    %c0_24 = arith.constant 0 : index
    %c0_25 = arith.constant 0 : index
    %29 = vector.load %arg5[%c0_23, %c0_24, %c0_25] : memref<1x2x384xf32, #tpu.memory_space<vmem>>, vector<1x1x256xf32>
    %30 = vector.shape_cast %29 : vector<1x1x256xf32> to vector<1x256xf32>
    %31 = vector.broadcast %28 : f32 to vector<1x256xf32>
    %32 = arith.mulf %30, %31 : vector<1x256xf32>
    %33 = arith.addf %27, %32 : vector<1x256xf32>
    %c3_26 = arith.constant 3 : index
    %34 = memref.load %arg2[%c3_26] : memref<18xf32, #tpu.memory_space<smem>>
    %c0_27 = arith.constant 0 : index
    %c0_28 = arith.constant 0 : index
    %c16 = arith.constant 16 : index
    %35 = vector.load %arg5[%c0_27, %c0_28, %c16] : memref<1x2x384xf32, #tpu.memory_space<vmem>>, vector<1x1x256xf32>
    %36 = vector.shape_cast %35 : vector<1x1x256xf32> to vector<1x256xf32>
    %37 = vector.broadcast %34 : f32 to vector<1x256xf32>
    %38 = arith.mulf %36, %37 : vector<1x256xf32>
    %39 = arith.addf %33, %38 : vector<1x256xf32>
    %c6 = arith.constant 6 : index
    %40 = memref.load %arg2[%c6] : memref<18xf32, #tpu.memory_space<smem>>
    %c0_29 = arith.constant 0 : index
    %c0_30 = arith.constant 0 : index
    %c32 = arith.constant 32 : index
    %41 = vector.load %arg5[%c0_29, %c0_30, %c32] : memref<1x2x384xf32, #tpu.memory_space<vmem>>, vector<1x1x256xf32>
    %42 = vector.shape_cast %41 : vector<1x1x256xf32> to vector<1x256xf32>
    %43 = vector.broadcast %40 : f32 to vector<1x256xf32>
    %44 = arith.mulf %42, %43 : vector<1x256xf32>
    %45 = arith.addf %39, %44 : vector<1x256xf32>
    %c9 = arith.constant 9 : index
    %46 = memref.load %arg2[%c9] : memref<18xf32, #tpu.memory_space<smem>>
    %c0_31 = arith.constant 0 : index
    %c1_32 = arith.constant 1 : index
    %c0_33 = arith.constant 0 : index
    %47 = vector.load %arg5[%c0_31, %c1_32, %c0_33] : memref<1x2x384xf32, #tpu.memory_space<vmem>>, vector<1x1x256xf32>
    %48 = vector.shape_cast %47 : vector<1x1x256xf32> to vector<1x256xf32>
    %49 = vector.broadcast %46 : f32 to vector<1x256xf32>
    %50 = arith.mulf %48, %49 : vector<1x256xf32>
    %51 = arith.addf %45, %50 : vector<1x256xf32>
    %c12 = arith.constant 12 : index
    %52 = memref.load %arg2[%c12] : memref<18xf32, #tpu.memory_space<smem>>
    %c0_34 = arith.constant 0 : index
    %c1_35 = arith.constant 1 : index
    %c16_36 = arith.constant 16 : index
    %53 = vector.load %arg5[%c0_34, %c1_35, %c16_36] : memref<1x2x384xf32, #tpu.memory_space<vmem>>, vector<1x1x256xf32>
    %54 = vector.shape_cast %53 : vector<1x1x256xf32> to vector<1x256xf32>
    %55 = vector.broadcast %52 : f32 to vector<1x256xf32>
    %56 = arith.mulf %54, %55 : vector<1x256xf32>
    %57 = arith.addf %51, %56 : vector<1x256xf32>
    %c15 = arith.constant 15 : index
    %58 = memref.load %arg2[%c15] : memref<18xf32, #tpu.memory_space<smem>>
    %c0_37 = arith.constant 0 : index
    %c1_38 = arith.constant 1 : index
    %c32_39 = arith.constant 32 : index
    %59 = vector.load %arg5[%c0_37, %c1_38, %c32_39] : memref<1x2x384xf32, #tpu.memory_space<vmem>>, vector<1x1x256xf32>
    %60 = vector.shape_cast %59 : vector<1x1x256xf32> to vector<1x256xf32>
    %61 = vector.broadcast %58 : f32 to vector<1x256xf32>
    %62 = arith.mulf %60, %61 : vector<1x256xf32>
    %63 = arith.addf %57, %62 : vector<1x256xf32>
    %c0_40 = arith.constant 0 : index
    %c0_41 = arith.constant 0 : index
    %64 = vector.load %arg3[%c0_40, %c0_41] : memref<3x256xf32, #tpu.memory_space<vmem>>, vector<1x256xf32>
    %65 = arith.mulf %63, %64 : vector<1x256xf32>
    %66 = arith.addf %26, %65 : vector<1x256xf32>
    %cst_42 = arith.constant 0.000000e+00 : f32
    %67 = vector.broadcast %cst_42 : f32 to vector<1x256xf32>
    %c1_43 = arith.constant 1 : index
    %68 = memref.load %arg2[%c1_43] : memref<18xf32, #tpu.memory_space<smem>>
    %c0_44 = arith.constant 0 : index
    %c0_45 = arith.constant 0 : index
    %c1_46 = arith.constant 1 : index
    %69 = vector.load %arg5[%c0_44, %c0_45, %c1_46] : memref<1x2x384xf32, #tpu.memory_space<vmem>>, vector<1x1x256xf32>
    %70 = vector.shape_cast %69 : vector<1x1x256xf32> to vector<1x256xf32>
    %71 = vector.broadcast %68 : f32 to vector<1x256xf32>
    %72 = arith.mulf %70, %71 : vector<1x256xf32>
    %73 = arith.addf %67, %72 : vector<1x256xf32>
    %c4 = arith.constant 4 : index
    %74 = memref.load %arg2[%c4] : memref<18xf32, #tpu.memory_space<smem>>
    %c0_47 = arith.constant 0 : index
    %c0_48 = arith.constant 0 : index
    %c17_49 = arith.constant 17 : index
    %75 = vector.load %arg5[%c0_47, %c0_48, %c17_49] : memref<1x2x384xf32, #tpu.memory_space<vmem>>, vector<1x1x256xf32>
    %76 = vector.shape_cast %75 : vector<1x1x256xf32> to vector<1x256xf32>
    %77 = vector.broadcast %74 : f32 to vector<1x256xf32>
    %78 = arith.mulf %76, %77 : vector<1x256xf32>
    %79 = arith.addf %73, %78 : vector<1x256xf32>
    %c7 = arith.constant 7 : index
    %80 = memref.load %arg2[%c7] : memref<18xf32, #tpu.memory_space<smem>>
    %c0_50 = arith.constant 0 : index
    %c0_51 = arith.constant 0 : index
    %c33 = arith.constant 33 : index
    %81 = vector.load %arg5[%c0_50, %c0_51, %c33] : memref<1x2x384xf32, #tpu.memory_space<vmem>>, vector<1x1x256xf32>
    %82 = vector.shape_cast %81 : vector<1x1x256xf32> to vector<1x256xf32>
    %83 = vector.broadcast %80 : f32 to vector<1x256xf32>
    %84 = arith.mulf %82, %83 : vector<1x256xf32>
    %85 = arith.addf %79, %84 : vector<1x256xf32>
    %c10 = arith.constant 10 : index
    %86 = memref.load %arg2[%c10] : memref<18xf32, #tpu.memory_space<smem>>
    %c0_52 = arith.constant 0 : index
    %c1_53 = arith.constant 1 : index
    %c1_54 = arith.constant 1 : index
    %87 = vector.load %arg5[%c0_52, %c1_53, %c1_54] : memref<1x2x384xf32, #tpu.memory_space<vmem>>, vector<1x1x256xf32>
    %88 = vector.shape_cast %87 : vector<1x1x256xf32> to vector<1x256xf32>
    %89 = vector.broadcast %86 : f32 to vector<1x256xf32>
    %90 = arith.mulf %88, %89 : vector<1x256xf32>
    %91 = arith.addf %85, %90 : vector<1x256xf32>
    %c13 = arith.constant 13 : index
    %92 = memref.load %arg2[%c13] : memref<18xf32, #tpu.memory_space<smem>>
    %c0_55 = arith.constant 0 : index
    %c1_56 = arith.constant 1 : index
    %c17_57 = arith.constant 17 : index
    %93 = vector.load %arg5[%c0_55, %c1_56, %c17_57] : memref<1x2x384xf32, #tpu.memory_space<vmem>>, vector<1x1x256xf32>
    %94 = vector.shape_cast %93 : vector<1x1x256xf32> to vector<1x256xf32>
    %95 = vector.broadcast %92 : f32 to vector<1x256xf32>
    %96 = arith.mulf %94, %95 : vector<1x256xf32>
    %97 = arith.addf %91, %96 : vector<1x256xf32>
    %c16_58 = arith.constant 16 : index
    %98 = memref.load %arg2[%c16_58] : memref<18xf32, #tpu.memory_space<smem>>
    %c0_59 = arith.constant 0 : index
    %c1_60 = arith.constant 1 : index
    %c33_61 = arith.constant 33 : index
    %99 = vector.load %arg5[%c0_59, %c1_60, %c33_61] : memref<1x2x384xf32, #tpu.memory_space<vmem>>, vector<1x1x256xf32>
    %100 = vector.shape_cast %99 : vector<1x1x256xf32> to vector<1x256xf32>
    %101 = vector.broadcast %98 : f32 to vector<1x256xf32>
    %102 = arith.mulf %100, %101 : vector<1x256xf32>
    %103 = arith.addf %97, %102 : vector<1x256xf32>
    %c1_62 = arith.constant 1 : index
    %c0_63 = arith.constant 0 : index
    %104 = vector.load %arg3[%c1_62, %c0_63] : memref<3x256xf32, #tpu.memory_space<vmem>>, vector<1x256xf32>
    %105 = arith.mulf %103, %104 : vector<1x256xf32>
    %106 = arith.addf %66, %105 : vector<1x256xf32>
    %cst_64 = arith.constant 0.000000e+00 : f32
    %107 = vector.broadcast %cst_64 : f32 to vector<1x256xf32>
    %c2_65 = arith.constant 2 : index
    %108 = memref.load %arg2[%c2_65] : memref<18xf32, #tpu.memory_space<smem>>
    %c0_66 = arith.constant 0 : index
    %c0_67 = arith.constant 0 : index
    %c2_68 = arith.constant 2 : index
    %109 = vector.load %arg5[%c0_66, %c0_67, %c2_68] : memref<1x2x384xf32, #tpu.memory_space<vmem>>, vector<1x1x256xf32>
    %110 = vector.shape_cast %109 : vector<1x1x256xf32> to vector<1x256xf32>
    %111 = vector.broadcast %108 : f32 to vector<1x256xf32>
    %112 = arith.mulf %110, %111 : vector<1x256xf32>
    %113 = arith.addf %107, %112 : vector<1x256xf32>
    %c5 = arith.constant 5 : index
    %114 = memref.load %arg2[%c5] : memref<18xf32, #tpu.memory_space<smem>>
    %c0_69 = arith.constant 0 : index
    %c0_70 = arith.constant 0 : index
    %c18 = arith.constant 18 : index
    %115 = vector.load %arg5[%c0_69, %c0_70, %c18] : memref<1x2x384xf32, #tpu.memory_space<vmem>>, vector<1x1x256xf32>
    %116 = vector.shape_cast %115 : vector<1x1x256xf32> to vector<1x256xf32>
    %117 = vector.broadcast %114 : f32 to vector<1x256xf32>
    %118 = arith.mulf %116, %117 : vector<1x256xf32>
    %119 = arith.addf %113, %118 : vector<1x256xf32>
    %c8 = arith.constant 8 : index
    %120 = memref.load %arg2[%c8] : memref<18xf32, #tpu.memory_space<smem>>
    %c0_71 = arith.constant 0 : index
    %c0_72 = arith.constant 0 : index
    %c34 = arith.constant 34 : index
    %121 = vector.load %arg5[%c0_71, %c0_72, %c34] : memref<1x2x384xf32, #tpu.memory_space<vmem>>, vector<1x1x256xf32>
    %122 = vector.shape_cast %121 : vector<1x1x256xf32> to vector<1x256xf32>
    %123 = vector.broadcast %120 : f32 to vector<1x256xf32>
    %124 = arith.mulf %122, %123 : vector<1x256xf32>
    %125 = arith.addf %119, %124 : vector<1x256xf32>
    %c11 = arith.constant 11 : index
    %126 = memref.load %arg2[%c11] : memref<18xf32, #tpu.memory_space<smem>>
    %c0_73 = arith.constant 0 : index
    %c1_74 = arith.constant 1 : index
    %c2_75 = arith.constant 2 : index
    %127 = vector.load %arg5[%c0_73, %c1_74, %c2_75] : memref<1x2x384xf32, #tpu.memory_space<vmem>>, vector<1x1x256xf32>
    %128 = vector.shape_cast %127 : vector<1x1x256xf32> to vector<1x256xf32>
    %129 = vector.broadcast %126 : f32 to vector<1x256xf32>
    %130 = arith.mulf %128, %129 : vector<1x256xf32>
    %131 = arith.addf %125, %130 : vector<1x256xf32>
    %c14 = arith.constant 14 : index
    %132 = memref.load %arg2[%c14] : memref<18xf32, #tpu.memory_space<smem>>
    %c0_76 = arith.constant 0 : index
    %c1_77 = arith.constant 1 : index
    %c18_78 = arith.constant 18 : index
    %133 = vector.load %arg5[%c0_76, %c1_77, %c18_78] : memref<1x2x384xf32, #tpu.memory_space<vmem>>, vector<1x1x256xf32>
    %134 = vector.shape_cast %133 : vector<1x1x256xf32> to vector<1x256xf32>
    %135 = vector.broadcast %132 : f32 to vector<1x256xf32>
    %136 = arith.mulf %134, %135 : vector<1x256xf32>
    %137 = arith.addf %131, %136 : vector<1x256xf32>
    %c17_79 = arith.constant 17 : index
    %138 = memref.load %arg2[%c17_79] : memref<18xf32, #tpu.memory_space<smem>>
    %c0_80 = arith.constant 0 : index
    %c1_81 = arith.constant 1 : index
    %c34_82 = arith.constant 34 : index
    %139 = vector.load %arg5[%c0_80, %c1_81, %c34_82] : memref<1x2x384xf32, #tpu.memory_space<vmem>>, vector<1x1x256xf32>
    %140 = vector.shape_cast %139 : vector<1x1x256xf32> to vector<1x256xf32>
    %141 = vector.broadcast %138 : f32 to vector<1x256xf32>
    %142 = arith.mulf %140, %141 : vector<1x256xf32>
    %143 = arith.addf %137, %142 : vector<1x256xf32>
    %c2_83 = arith.constant 2 : index
    %c0_84 = arith.constant 0 : index
    %144 = vector.load %arg3[%c2_83, %c0_84] : memref<3x256xf32, #tpu.memory_space<vmem>>, vector<1x256xf32>
    %145 = arith.mulf %143, %144 : vector<1x256xf32>
    %146 = arith.addf %106, %145 : vector<1x256xf32>
    %147 = arith.negf %146 : vector<1x256xf32>
    %148 = math.exp %147 : vector<1x256xf32>
    %cst_85 = arith.constant 1.000000e+00 : f32
    %149 = vector.broadcast %cst_85 : f32 to vector<1x256xf32>
    %150 = arith.addf %149, %148 : vector<1x256xf32>
    %151 = arith.divf %149, %150 : vector<1x256xf32>
    %c0_86 = arith.constant 0 : index
    %c0_87 = arith.constant 0 : index
    %c0_88 = arith.constant 0 : index
    %152 = vector.load %arg4[%c0_86, %c0_87, %c0_88] : memref<1x1x256xf32, #tpu.memory_space<vmem>>, vector<1x1x256xf32>
    %153 = vector.shape_cast %152 : vector<1x1x256xf32> to vector<1x256xf32>
    %154 = vector.shape_cast %151 : vector<1x256xf32> to vector<1x1x256xf32>
    tpu.vector_store %arg4[%c0_86, %c0_87, %c0_88], %154 {strides = array<i32>} : memref<1x1x256xf32, #tpu.memory_space<vmem>>, vector<1x1x256xf32>,
    return
  }
  func.func @transform_0(%arg0: i32) -> (i32, i32, i32) {
    %c0_i32 = arith.constant 0 : i32
    %c0_i32_0 = arith.constant 0 : i32
    %c0_i32_1 = arith.constant 0 : i32
    return %arg0, %c0_i32, %c0_i32_0 : i32, i32, i32
  }
  func.func @transform_1(%arg0: i32) -> i32 {
    %c0_i32 = arith.constant 0 : i32
    %c0_i32_0 = arith.constant 0 : i32
    return %c0_i32 : i32
  }
  func.func @transform_2(%arg0: i32) -> (i32, i32) {
    %c0_i32 = arith.constant 0 : i32
    %c0_i32_0 = arith.constant 0 : i32
    %c0_i32_1 = arith.constant 0 : i32
    return %c0_i32, %c0_i32_0 : i32, i32
  }
  func.func @transform_3(%arg0: i32) -> (i32, i32, i32) {
    %c0_i32 = arith.constant 0 : i32
    %c0_i32_0 = arith.constant 0 : i32
    %c0_i32_1 = arith.constant 0 : i32
    return %arg0, %c0_i32, %c0_i32_0 : i32, i32, i32
  }
}

</mosaic_0001>

<llo_original>
// kernel: tpu_custom_call.1
$region0: #{tpu_custom_call.1}
  #allocation0 [shape = 'u32[]', space=smem, size = 0x4, offset = 0x4, fixed_abs, tag = 'smem constant byte address 0x4 - core index']
  #allocation1 [shape = 'u32[72,128]{1,0:T(1,128)}', space=vmem, size = 0x9000, scoped, tag = 'internal scratch']
  #allocation2 [shape = 'f32[1,2,384]{2,1,0:T(2,128)}', space=vmem, size = 0xc00, scoped, tag = 'scratch operand']
  %s0 = inlined_call_operand.hbm [shape: f32[2,4,256], index: 0, kind: input, shape index: {}]
  %s1 = inlined_call_operand.hbm [shape: f32[18], index: 1, kind: input, shape index: {}]
  %s2 = inlined_call_operand.hbm [shape: f32[3,256], index: 2, kind: input, shape index: {}]
  %s3 = inlined_call_operand.hbm [shape: f32[2,1,256], index: 3, kind: output, shape index: {}]
  %s4 = sld [smem:[#allocation0]]
  $region57: #{tpu_custom_call.1} parent=0
    _
  %s6 = ssub.s32 1, %s4
  %s7 = scalar_select 0, %s6, %s4
  $region1: #{tpu_custom_call.1} parent=0
    #allocation3 [shape = 'u8[8192]{0}', space=vmem, size = 0x2000, scoped, tag = 'input window, operand 0']
    #allocation4 [shape = 's32[2]{0}', space=sflag, size = 0x8, scoped, tag = 'scoped memory for tpu_custom_call.1']
    #allocation5 [shape = 's32[2]{0}', space=sflag, size = 0x8, scoped, tag = 'scoped memory for tpu_custom_call.1']
    #allocation6 [shape = 's32[2]{0}', space=sflag, size = 0x8, scoped, tag = 'scoped memory for tpu_custom_call.1']
    #allocation7 [shape = 'u8[512]{0}', space=smem, size = 0x200, scoped, tag = 'input window, operand 1, single buffered']
    #allocation8 [shape = 'u8[4096]{0}', space=vmem, size = 0x1000, scoped, tag = 'input window, operand 2, single buffered']
    #allocation9 [shape = 's32[1]{0}', space=sflag, size = 0x4, scoped, tag = 'scoped memory for tpu_custom_call.1']
    #allocation10 [shape = 'u8[2048]{0}', space=vmem, size = 0x800, scoped, tag = 'output window, operand 0']
    %8 = vsyncpa [#allocation4], 0
    %s9 = scalar_lea.sflag [#allocation4], 1
    %10 = vsyncpa %s9, 0
    %11 = vsyncpa [#allocation6], 0
    %12 = vsyncpa [#allocation9], 0
    %13 = vsyncpa [#allocation5], 0
    %s14 = scalar_lea.sflag [#allocation5], 1
    %15 = vsyncpa %s14, 0
    loop: start=0, step=1, limit=4
    $region2: #{tpu_custom_call.1} parent=1 // loop_pre_header
      _
    $region3: #{tpu_custom_call.1} parent=1 // loop_header
      %s17 = sphi 0, %s21
      %p18 = scmp.ge.s32.totalorder %s17, 4
      %s27 = sphi 0, %s29
      %s30 = sphi 0, %s27
      %s31 = sphi 0, %s30
      %s47 = sphi 0, %s31
      %s51 = sphi 0, %s51
      %s53 = sphi 0, %s51
      %s54 = sphi 0, %s53
      %s68 = sphi 0, %s54
      %s72 = sphi 0, %s72
      %s74 = sphi 0, %s72
      %s75 = sphi 0, %s74
      %s89 = sphi 0, %s75
      %s95 = sphi 0, %s97
      %s98 = sphi 0, %s95
      %s99 = sphi 0, %s98
      %s115 = sphi 0, %s99
    $region4: #{tpu_custom_call.1} parent=1 // loop_header_branch
      %20 = sbr.rel (%p18) target = $region8
    $region5: #{tpu_custom_call.1} parent=1 // loop_body
      %s22 = ssub.s32 %s17, 1
      %s23 = ssub.s32 %s17, 2
      %s24 = sadd.s32 %s17, 1
      %s25 = ssub.s32 %s17, %s24
      %p26 = scmp.eq.s32.totalorder %s25, 0
      %s28 = sadd.s32 %s27, 1
      %s29 = scalar_select %p26, %s27, %s28
      %p32 = pneg %p26
      %p33 = scmp.eq.s32.totalorder %s17, 1
      %p34 = por %p32, %p33
      %p35 = scmp.ne.s32.totalorder %s27, %s30
      %p36 = scmp.eq.s32.totalorder %s17, 0
      %p37 = por %p35, %p36
      %p38 = scmp.ne.s32.totalorder %s27, %s30
      %p39 = scmp.eq.s32.totalorder %s22, 1
      %p40 = por %p38, %p39
      %p41 = scmp.ne.s32.totalorder %s30, %s31
      %p42 = scmp.eq.s32.totalorder %s22, 0
      %p43 = por %p41, %p42
      %p44 = scmp.ne.s32.totalorder %s30, %s31
      %p45 = scmp.eq.s32.totalorder %s23, 1
      %p46 = por %p44, %p45
      %p48 = scmp.ne.s32.totalorder %s31, %s47
      %p49 = scmp.eq.s32.totalorder %s23, 0
      %p50 = por %p48, %p49
      %s52 = sadd.s32 %s51, 1
      %p55 = scmp.eq.s32.totalorder %s17, 1
      %p56 = scmp.ne.s32.totalorder %s51, %s53
      %p57 = scmp.eq.s32.totalorder %s17, 0
      %p58 = por %p56, %p57
      %p59 = scmp.ne.s32.totalorder %s51, %s53
      %p60 = scmp.eq.s32.totalorder %s22, 1
      %p61 = por %p59, %p60
      %p62 = scmp.ne.s32.totalorder %s53, %s54
      %p63 = scmp.eq.s32.totalorder %s22, 0
      %p64 = por %p62, %p63
      %p65 = scmp.ne.s32.totalorder %s53, %s54
      %p66 = scmp.eq.s32.totalorder %s23, 1
      %p67 = por %p65, %p66
      %p69 = scmp.ne.s32.totalorder %s54, %s68
      %p70 = scmp.eq.s32.totalorder %s23, 0
      %p71 = por %p69, %p70
      %s73 = sadd.s32 %s72, 1
      %p76 = scmp.eq.s32.totalorder %s17, 1
      %p77 = scmp.ne.s32.totalorder %s72, %s74
      %p78 = scmp.eq.s32.totalorder %s17, 0
      %p79 = por %p77, %p78
      %p80 = scmp.ne.s32.totalorder %s72, %s74
      %p81 = scmp.eq.s32.totalorder %s22, 1
      %p82 = por %p80, %p81
      %p83 = scmp.ne.s32.totalorder %s74, %s75
      %p84 = scmp.eq.s32.totalorder %s22, 0
      %p85 = por %p83, %p84
      %p86 = scmp.ne.s32.totalorder %s74, %s75
      %p87 = scmp.eq.s32.totalorder %s23, 1
      %p88 = por %p86, %p87
      %p90 = scmp.ne.s32.totalorder %s75, %s89
      %p91 = scmp.eq.s32.totalorder %s23, 0
      %p92 = por %p90, %p91
      %s93 = ssub.s32 %s17, %s24
      %p94 = scmp.eq.s32.totalorder %s93, 0
      %s96 = sadd.s32 %s95, 1
      %s97 = scalar_select %p94, %s95, %s96
      %p100 = pneg %p94
      %p101 = scmp.eq.s32.totalorder %s17, 1
      %p102 = por %p100, %p101
      %p103 = scmp.ne.s32.totalorder %s95, %s98
      %p104 = scmp.eq.s32.totalorder %s17, 0
      %p105 = por %p103, %p104
      %p106 = scmp.ne.s32.totalorder %s95, %s98
      %p107 = scmp.eq.s32.totalorder %s22, 1
      %p108 = por %p106, %p107
      %p109 = scmp.ne.s32.totalorder %s98, %s99
      %p110 = scmp.eq.s32.totalorder %s22, 0
      %p111 = por %p109, %p110
      %p112 = scmp.ne.s32.totalorder %s98, %s99
      %p113 = scmp.eq.s32.totalorder %s23, 1
      %p114 = por %p112, %p113
      %p116 = scmp.ne.s32.totalorder %s99, %s115
      %p117 = scmp.eq.s32.totalorder %s23, 0
      %p118 = por %p116, %p117
      %p119 = scmp.le.s32.totalorder 1, %s17
      %p120 = scmp.lt.s32.totalorder %s17, 3
      %p121 = pnand %p119, %p120
      %p122 = pneg %p121
      // Predicated region
      $region9: #{tpu_custom_call.1} parent=5 // pred_check
        _
      $region10: #{tpu_custom_call.1} parent=5 // pred_check_branch
        %124 = sbr.rel (%p121) target = $region12
      $region11: #{tpu_custom_call.1} parent=5 // pred_region
        %s125 = ssub.s32 %s17, 1
        // Predicated region
        $region13: #{tpu_custom_call.1} parent=11 // pred_check
          %p126 = pneg %p64
        $region14: #{tpu_custom_call.1} parent=11 // pred_check_branch
          %128 = sbr.rel (%p126) target = $region16
        $region15: #{tpu_custom_call.1} parent=11 // pred_region
          %130 = vsyncadd [#allocation6], 0
          %s132 = sshll.u32 %s1, 4
          %s133 = int_to_ptr.hbm [resolvable:$true] %s132
          %135 = dma.hbm_to_smem %s133, 16, [#allocation7], [#allocation6]
        $region16: #{tpu_custom_call.1} parent=11 // pred_fallthru
          _
        // Predicated region
        $region17: #{tpu_custom_call.1} parent=11 // pred_check
          %p136 = pneg %p85
        $region18: #{tpu_custom_call.1} parent=11 // pred_check_branch
          %138 = sbr.rel (%p136) target = $region20
        $region19: #{tpu_custom_call.1} parent=11 // pred_region
          %140 = vsyncadd [#allocation9], 0
          %s142 = sshll.u32 %s2, 4
          %s143 = int_to_ptr.hbm [resolvable:$true] %s142
          %s144 = sshll.u32 [#allocation8], 4
          %s145 = int_to_ptr.vmem [resolvable:$true] %s144
          %147 = dma.hbm_to_vmem [thread:$0]  %s143, 128, %s145, [#allocation9]
        $region20: #{tpu_custom_call.1} parent=11 // pred_fallthru
          _
      $region12: #{tpu_custom_call.1} parent=5 // pred_fallthru
        _
      %p148 = scmp.lt.s32.totalorder %s17, 2
      // Predicated region
      $region21: #{tpu_custom_call.1} parent=5 // pred_check
        %p149 = pneg %p148
      $region22: #{tpu_custom_call.1} parent=5 // pred_check_branch
        %151 = sbr.rel (%p149) target = $region24
      $region23: #{tpu_custom_call.1} parent=5 // pred_region
        // Predicated region
        $region25: #{tpu_custom_call.1} parent=23 // pred_check
          %p152 = pneg %p37
        $region26: #{tpu_custom_call.1} parent=23 // pred_check_branch
          %154 = sbr.rel (%p152) target = $region28
        $region27: #{tpu_custom_call.1} parent=23 // pred_region
          %s155 = sand.u32 %s27, 1
          %s156 = scalar_lea.sflag [#allocation4], %s155
          %s157 = sand.u32 %s27, 1
          %s158 = smul.addr %s157, 8
          %s159 = scalar_lea.vmem [#allocation3], %s158
          %161 = vsyncadd %s156, 0
          %s162 = smul.addr %s17, 2
          %s163 = smul.addr %s162, 4
          %s164 = scalar_lea.hbm %s0, %s163
          %s166 = sshll.u32 %s164, 4
          %s167 = int_to_ptr.hbm [resolvable:$true] %s166
          %s168 = sshll.u32 %s159, 4
          %s169 = int_to_ptr.vmem [resolvable:$true] %s168
          %171 = dma.hbm_to_vmem [thread:$0]  %s167, 128, %s169, %s156
        $region28: #{tpu_custom_call.1} parent=23 // pred_fallthru
          _
      $region24: #{tpu_custom_call.1} parent=5 // pred_fallthru
        _
      %p172 = scmp.le.s32.totalorder 1, %s17
      %p173 = scmp.lt.s32.totalorder %s17, 3
      %p174 = pnand %p172, %p173
      %p175 = pneg %p174
      // Predicated region
      $region29: #{tpu_custom_call.1} parent=5 // pred_check
        _
      $region30: #{tpu_custom_call.1} parent=5 // pred_check_branch
        %177 = sbr.rel (%p174) target = $region32
      $region31: #{tpu_custom_call.1} parent=5 // pred_region
        %s178 = ssub.s32 %s17, 1
        %s179 = sand.u32 %s30, 1
        %s180 = scalar_lea.sflag [#allocation4], %s179
        %s181 = sand.u32 %s30, 1
        %s182 = smul.addr %s181, 8
        %s183 = scalar_lea.vmem [#allocation3], %s182
        // Predicated region
        $region33: #{tpu_custom_call.1} parent=31 // pred_check
          %p184 = pneg %p43
        $region34: #{tpu_custom_call.1} parent=31 // pred_check_branch
          %186 = sbr.rel (%p184) target = $region36
        $region35: #{tpu_custom_call.1} parent=31 // pred_region
          %188 = dma.done %s180, 128
        $region36: #{tpu_custom_call.1} parent=31 // pred_fallthru
          _
        // Predicated region
        $region37: #{tpu_custom_call.1} parent=31 // pred_check
          %p189 = pneg %p64
        $region38: #{tpu_custom_call.1} parent=31 // pred_check_branch
          %191 = sbr.rel (%p189) target = $region40
        $region39: #{tpu_custom_call.1} parent=31 // pred_region
          %193 = dma.done [#allocation6], 16
        $region40: #{tpu_custom_call.1} parent=31 // pred_fallthru
          _
        // Predicated region
        $region41: #{tpu_custom_call.1} parent=31 // pred_check
          %p194 = pneg %p85
        $region42: #{tpu_custom_call.1} parent=31 // pred_check_branch
          %196 = sbr.rel (%p194) target = $region44
        $region43: #{tpu_custom_call.1} parent=31 // pred_region
          %198 = dma.done [#allocation9], 128
        $region44: #{tpu_custom_call.1} parent=31 // pred_fallthru
          _
        %199 = sfence
        %s200 = sand.u32 %s30, 1
        %s201 = scalar_lea.sflag [#allocation4], %s200
        %s202 = sand.u32 %s30, 1
        %s203 = smul.addr %s202, 8
        %s204 = scalar_lea.vmem [#allocation3], %s203
        %p205 = pneg %p43
        %p206 = pneg %p40
        %p207 = pneg %p64
        %p208 = pneg %p61
        %p209 = pneg %p85
        %p210 = pneg %p82
        %p211 = pneg %p111
        %p212 = pneg %p108
        %s213 = sand.u32 %s98, 1
        %s214 = scalar_lea.sflag [#allocation5], %s213
        %s215 = sand.u32 %s98, 1
        %s216 = smul.addr %s215, 2
        %s217 = scalar_lea.vmem [#allocation10], %s216
        %v218 = vld [vmem:[%s183] ss:$4 sm:$0x3]
        %s219 = scalar_lea.vmem %s183, 1 [#allocation3]
        %v220 = vld [vmem:[%s219] ss:$4 sm:$0x3]
        %v221 = vadd.f32 %v218, %v220
        %v222 = vmax.f32 %v218, %v220
        %s223 = scalar_lea.vmem %s183, 2 [#allocation3]
        %v224 = vld [vmem:[%s223] ss:$4 sm:$0x3]
        %v225 = vadd.f32 %v221, %v224
        %v226 = vmax.f32 %v222, %v224
        %s227 = scalar_lea.vmem %s183, 3 [#allocation3]
        %v228 = vld [vmem:[%s227] ss:$4 sm:$0x3]
        %v229 = vadd.f32 %v225, %v228
        %v230 = vmax.f32 %v226, %v228
        %v231 = vmul.f32 %v229, 0.25
        %vm232 = vcmask 132096
        %233 = vst.msk [vmem:[#allocation2] sm:$0x3] %vm232, 0.0
        %vm234 = vcmask 1041544
        %235 = vst.msk [vmem:[#allocation2 + $0x4] sm:$0x3] %vm234, 0.0
        %237 = vrot.lane.b32.xlu0 %v231, 17
        %v238 = vpop.permute.xlu0 %237
        %v239 = vrot.slane %v238, 7
        %vm240 = vcmask 138240
        %v241 = vsel %vm240, %v239, %v238
        %v243 = vlaneseq
        %vm244 = vcmp.ge.s32.totalorder %v243, 17
        %vm245 = vcmp.lt.s32.totalorder %v243, 273
        %vm246 = vmand %vm244, %vm245
        %247 = vst.msk [vmem:[#allocation2] ss:$2 sm:$0x7] %vm246, %v241
        %249 = vrot.lane.b32.xlu0 %v230, 17
        %v250 = vpop.permute.xlu0 %249
        %v251 = vrot.slane %v250, 7
        %v252 = vsel %vm240, %v251, %v250
        %s254 = scalar_lea.vmem [#allocation2], 1
        %255 = vst.msk [vmem:[%s254] ss:$2 sm:$0x7] %vm246, %v252
        %s256 = sld [smem:[#allocation7]]
        %v257 = vld [vmem:[#allocation2] ss:$2 sm:$0x3]
        %v258 = vstv %s256
        %v259 = vmul.f32 %v257, %v258
        %v260 = vadd.f32 %v259, 0.0
        %s261 = sld [smem:[#allocation7 + $0x3]]
        %v262 = vld [vmem:[#allocation2] ss:$2 sm:$0x7]
        %v263 = vstv %s261
        %v264 = vmul.f32 %v262, %v263
        %266 = vrot.lane.b32.xlu0 %v264, 112
        %v267 = vpop.permute.xlu0 %266
        %v268 = vrot.slane %v267, 1
        %vm269 = vcmask 916480
        %v270 = vsel %vm269, %v267, %v268
        %v272 = vadd.f32 %v260, %v270
        %s273 = sld [smem:[#allocation7 + $0x6]]
        %v274 = vstv %s273
        %v275 = vmul.f32 %v262, %v274
        %277 = vrot.lane.b32.xlu0 %v275, 96
        %v278 = vpop.permute.xlu0 %277
        %v279 = vrot.slane %v278, 1
        %vm280 = vcmask 785408
        %v281 = vsel %vm280, %v278, %v279
        %v283 = vadd.f32 %v272, %v281
        %s284 = sld [smem:[#allocation7 + $0x9]]
        %s285 = scalar_lea.vmem [#allocation2], 1
        %v286 = vld [vmem:[%s285] ss:$2 sm:$0x3]
        %v287 = vstv %s284
        %v288 = vmul.f32 %v286, %v287
        %v289 = vadd.f32 %v283, %v288
        %s290 = sld [smem:[#allocation7 + $0xc]]
        %v291 = vld [vmem:[%s254] ss:$2 sm:$0x7]
        %v292 = vstv %s290
        %v293 = vmul.f32 %v291, %v292
        %295 = vrot.lane.b32.xlu0 %v293, 112
        %v296 = vpop.permute.xlu0 %295
        %v297 = vrot.slane %v296, 1
        %v298 = vsel %vm269, %v296, %v297
        %v300 = vadd.f32 %v289, %v298
        %s301 = sld [smem:[#allocation7 + $0xf]]
        %v302 = vstv %s301
        %v303 = vmul.f32 %v291, %v302
        %305 = vrot.lane.b32.xlu0 %v303, 96
        %v306 = vpop.permute.xlu0 %305
        %v307 = vrot.slane %v306, 1
        %v308 = vsel %vm280, %v306, %v307
        %v310 = vadd.f32 %v300, %v308
        %v311 = vld [vmem:[#allocation8] ss:$4 sm:$0x3]
        %v312 = vmul.f32 %v310, %v311
        %v313 = vadd.f32 %v312, 0.0
        %s314 = sld [smem:[#allocation7 + $0x1]]
        %v315 = vstv %s314
        %v316 = vmul.f32 %v262, %v315
        %v317 = vadd.f32 %v316, 0.0
        %s318 = sld [smem:[#allocation7 + $0x4]]
        %v319 = vstv %s318
        %v320 = vmul.f32 %v262, %v319
        %322 = vrot.lane.b32.xlu0 %v320, 112
        %v323 = vpop.permute.xlu0 %322
        %v324 = vrot.slane %v323, 1
        %v325 = vsel %vm269, %v323, %v324
        %v327 = vadd.f32 %v317, %v325
        %s328 = sld [smem:[#allocation7 + $0x7]]
        %v329 = vstv %s328
        %v330 = vmul.f32 %v262, %v329
        %332 = vrot.lane.b32.xlu0 %v330, 96
        %v333 = vpop.permute.xlu0 %332
        %v334 = vrot.slane %v333, 1
        %v335 = vsel %vm280, %v333, %v334
        %v337 = vadd.f32 %v327, %v335
        %s338 = sld [smem:[#allocation7 + $0xa]]
        %v339 = vstv %s338
        %v340 = vmul.f32 %v291, %v339
        %v341 = vadd.f32 %v337, %v340
        %s342 = sld [smem:[#allocation7 + $0xd]]
        %v343 = vstv %s342
        %v344 = vmul.f32 %v291, %v343
        %346 = vrot.lane.b32.xlu0 %v344, 112
        %v347 = vpop.permute.xlu0 %346
        %v348 = vrot.slane %v347, 1
        %v349 = vsel %vm269, %v347, %v348
        %v351 = vadd.f32 %v341, %v349
        %s352 = sld [smem:[#allocation7 + $0x10]]
        %v353 = vstv %s352
        %v354 = vmul.f32 %v291, %v353
        %356 = vrot.lane.b32.xlu0 %v354, 96
        %v357 = vpop.permute.xlu0 %356
        %v358 = vrot.slane %v357, 1
        %v359 = vsel %vm280, %v357, %v358
        %v361 = vadd.f32 %v351, %v359
        %s362 = scalar_lea.vmem [#allocation8], 1
        %v363 = vld [vmem:[%s362] ss:$4 sm:$0x3]
        %365 = vrot.lane.b32.xlu0 %v363, 1
        %v366 = vpop.permute.xlu0 %365
        %v367 = vrot.slane %v366, 7
        %vm368 = vcmask 7168
        %v369 = vsel %vm368, %v367, %v366
        %v371 = vmul.f32 %v361, %v369
        %373 = vrot.lane.b32.xlu0 %v371, 127
        %v374 = vpop.permute.xlu0 %373
        %v375 = vrot.slane %v374, 1
        %vm376 = vcmask 1039360
        %v377 = vsel %vm376, %v374, %v375
        %v379 = vadd.f32 %v313, %v377
        %s380 = sld [smem:[#allocation7 + $0x2]]
        %v381 = vstv %s380
        %v382 = vmul.f32 %v262, %v381
        %v383 = vadd.f32 %v382, 0.0
        %s384 = sld [smem:[#allocation7 + $0x5]]
        %v385 = vstv %s384
        %v386 = vmul.f32 %v262, %v385
        %388 = vrot.lane.b32.xlu0 %v386, 112
        %v389 = vpop.permute.xlu0 %388
        %v390 = vrot.slane %v389, 1
        %v391 = vsel %vm269, %v389, %v390
        %v393 = vadd.f32 %v383, %v391
        %s394 = sld [smem:[#allocation7 + $0x8]]
        %v395 = vstv %s394
        %v396 = vmul.f32 %v262, %v395
        %398 = vrot.lane.b32.xlu0 %v396, 96
        %v399 = vpop.permute.xlu0 %398
        %v400 = vrot.slane %v399, 1
        %v401 = vsel %vm280, %v399, %v400
        %v403 = vadd.f32 %v393, %v401
        %s404 = sld [smem:[#allocation7 + $0xb]]
        %v405 = vstv %s404
        %v406 = vmul.f32 %v291, %v405
        %v407 = vadd.f32 %v403, %v406
        %s408 = sld [smem:[#allocation7 + $0xe]]
        %v409 = vstv %s408
        %v410 = vmul.f32 %v291, %v409
        %412 = vrot.lane.b32.xlu0 %v410, 112
        %v413 = vpop.permute.xlu0 %412
        %v414 = vrot.slane %v413, 1
        %v415 = vsel %vm269, %v413, %v414
        %v417 = vadd.f32 %v407, %v415
        %s418 = sld [smem:[#allocation7 + $0x11]]
        %v419 = vstv %s418
        %v420 = vmul.f32 %v291, %v419
        %422 = vrot.lane.b32.xlu0 %v420, 96
        %v423 = vpop.permute.xlu0 %422
        %v424 = vrot.slane %v423, 1
        %v425 = vsel %vm280, %v423, %v424
        %v427 = vadd.f32 %v417, %v425
        %s428 = scalar_lea.vmem [#allocation8], 2
        %v429 = vld [vmem:[%s428] ss:$4 sm:$0x3]
        %431 = vrot.lane.b32.xlu0 %v429, 2
        %v432 = vpop.permute.xlu0 %431
        %v433 = vrot.slane %v432, 7
        %vm434 = vcmask 15360
        %v435 = vsel %vm434, %v433, %v432
        %v437 = vmul.f32 %v427, %v435
        %439 = vrot.lane.b32.xlu0 %v437, 126
        %v440 = vpop.permute.xlu0 %439
        %v441 = vrot.slane %v440, 1
        %vm442 = vcmask 1031168
        %v443 = vsel %vm442, %v440, %v441
        %v445 = vadd.f32 %v379, %v443
        %v446 = vxor.u32 %v445, 2147483648
        %v447 = vmul.f32 %v446, 1.442695
        %v448 = vpow.pop %v447
        %v449 = vadd.f32 %v448, 1.0
        %v450 = vrcp.pop %v449
        %v451 = vmul.f32 %v449, %v450
        %v452 = vsub.f32 1.0, %v451
        %v453 = vmul.f32 %v450, %v452
        %v454 = vadd.f32 %v450, %v453
        %vm455 = vweird.f32 %v449
        %vm456 = vweird.f32 %v450
        %vm457 = vmor %vm455, %vm456
        %v458 = vsel %vm457, %v450, %v454
        %v459 = vand.u32 2147483647, %v449
        %vm460 = vcmp.eq.f32.partialorder %v459, 8.507059e+37
        %v461 = vand.u32 %v449, 2147483648
        %v462 = vor.u32 1.1754944e-38, %v461
        %v463 = vsel %vm460, %v462, %v458
        %v464 = vmul.f32 1.0, %v463
        %vm465 = vcmp.ge.s32.totalorder %v243, 0
        %vm466 = vcmp.lt.s32.totalorder %v243, 256
        %vm467 = vmand %vm465, %vm466
        %468 = vst.msk [vmem:[%s217] sm:$0x3] %vm467, %v464
        %s469 = sand.u32 %s98, 1
        %s470 = scalar_lea.sflag [#allocation5], %s469
        %s471 = sand.u32 %s98, 1
        %s472 = smul.addr %s471, 2
        %s473 = scalar_lea.vmem [#allocation10], %s472
        // Predicated region
        $region45: #{tpu_custom_call.1} parent=31 // pred_check
          %p474 = pneg %p108
        $region46: #{tpu_custom_call.1} parent=31 // pred_check_branch
          %476 = sbr.rel (%p474) target = $region48
        $region47: #{tpu_custom_call.1} parent=31 // pred_region
          %478 = vsyncadd %s470, 0
          %s479 = smul.addr %s22, 2
          %s480 = scalar_lea.hbm %s3, %s479
          %s482 = sshll.u32 %s473, 4
          %s483 = int_to_ptr.vmem [resolvable:$true] %s482
          %s484 = sshll.u32 %s480, 4
          %s485 = int_to_ptr.hbm [resolvable:$true] %s484
          %487 = dma.vmem_to_hbm [thread:$0]  %s483, 32, %s485, %s470
        $region48: #{tpu_custom_call.1} parent=31 // pred_fallthru
          _
      $region32: #{tpu_custom_call.1} parent=5 // pred_fallthru
        _
      %p488 = scmp.le.s32.totalorder 2, %s17
      // Predicated region
      $region49: #{tpu_custom_call.1} parent=5 // pred_check
        %p489 = pneg %p488
      $region50: #{tpu_custom_call.1} parent=5 // pred_check_branch
        %491 = sbr.rel (%p489) target = $region52
      $region51: #{tpu_custom_call.1} parent=5 // pred_region
        %s492 = ssub.s32 %s17, 2
        // Predicated region
        $region53: #{tpu_custom_call.1} parent=51 // pred_check
          %p493 = pneg %p114
        $region54: #{tpu_custom_call.1} parent=51 // pred_check_branch
          %495 = sbr.rel (%p493) target = $region56
        $region55: #{tpu_custom_call.1} parent=51 // pred_region
          %s496 = sand.u32 %s99, 1
          %s497 = scalar_lea.sflag [#allocation5], %s496
          %s498 = sand.u32 %s99, 1
          %s499 = smul.addr %s498, 2
          %s500 = scalar_lea.vmem [#allocation10], %s499
          %502 = dma.done %s497, 32
        $region56: #{tpu_custom_call.1} parent=51 // pred_fallthru
          _
      $region52: #{tpu_custom_call.1} parent=5 // pred_fallthru
        _
    $region6: #{tpu_custom_call.1} parent=1 // loop_footer
      %s21 = sadd.s32 1, %s17
    $region7: #{tpu_custom_call.1} parent=1 // loop_footer_branch
      %16 = sbr.rel target = $region3
    $region8: #{tpu_custom_call.1} parent=1 // loop_exit
      _
    %503 = vsyncpa [#allocation4], 1
    %s504 = scalar_lea.sflag [#allocation4], 1
    %505 = vsyncpa %s504, 1
    %506 = vsyncpa [#allocation9], 1
    %507 = vsyncpa [#allocation5], 1
    %s508 = scalar_lea.sflag [#allocation5], 1
    %509 = vsyncpa %s508, 1
    %510 = vsyncpa [#allocation6], 1
    %s511 = scalar_lea.sflag [#allocation6], 1
    %512 = vsyncpa %s511, 1

</llo_original>
